<compile_context>
chip_gen: v7x
topology: tpu7x:2x2x1
jax: 0.10.0
libtpu: 0.0.40
codegen_flags: <defaults>
</compile_context>

<pallas_src>
import jax
import jax.numpy as jnp
from jax import lax
from jax.experimental import pallas as pl
from jax.experimental.pallas import tpu as pltpu

EPS_NORM = 1e-12  # torch F.normalize eps

TM_DEFAULT = 256
TN_DEFAULT = 512
TK_DEFAULT = 512


def _round_up(a, m):
    return (a + m - 1) // m * m


# ---------------------------------------------------------------------------
# Pallas kernels
# ---------------------------------------------------------------------------

def _matmul_kernel(x_ref, wt_ref, o_ref):
    """One (tm, tn) output tile of x @ W^T; whole K fits in one tile."""
    o_ref[...] = jnp.dot(x_ref[...], wt_ref[...],
                         preferred_element_type=jnp.float32).astype(o_ref.dtype)


def _matmul_acc_kernel(x_ref, wt_ref, o_ref, acc_ref):
    """Fallback: K reduction over grid axis 2 with a VMEM f32 accumulator."""
    @pl.when(pl.program_id(2) == 0)
    def _():
        acc_ref[...] = jnp.zeros_like(acc_ref)

    acc_ref[...] += jnp.dot(x_ref[...], wt_ref[...],
                            preferred_element_type=jnp.float32)

    @pl.when(pl.program_id(2) == pl.num_programs(2) - 1)
    def _():
        o_ref[...] = acc_ref[...].astype(o_ref.dtype)


def _l2_normalize_rows_kernel(w_ref, o_ref):
    """Row-wise F.normalize(w, dim=1, p=2): w / max(||w||, eps)."""
    w = w_ref[...]
    ssq = jnp.sum(w * w, axis=-1, keepdims=True)
    # rsqrt(max(ssq, eps^2)) == 1 / max(||w||, eps); lowers to the EUP slot.
    inv = lax.rsqrt(jnp.maximum(ssq, EPS_NORM * EPS_NORM))
    o_ref[...] = (w * inv).astype(o_ref.dtype)


# ---------------------------------------------------------------------------
# Weight preparation (done once, cached by the Prototypes class)
# ---------------------------------------------------------------------------

def prepare_prototype_weight(weight, *, tn=TN_DEFAULT, tk=TK_DEFAULT,
                             compute_dtype=None):
    """Transpose + pad the (P, D) prototype weight to a lane-dense (Dp, Pp)
    layout once, outside the per-forward hot path."""
    P, D = weight.shape
    tn = min(tn, _round_up(P, 128))
    tk = min(tk, _round_up(D, 128))
    Pp = _round_up(P, tn)
    Dp = _round_up(D, tk)

    wt = jnp.transpose(weight, (1, 0))                      # (D, P)
    if (Dp, Pp) != (D, P):
        wt = jnp.pad(wt, ((0, Dp - D), (0, Pp - P)))
    if compute_dtype is not None and wt.dtype != compute_dtype:
        wt = wt.astype(compute_dtype)
    return wt, (P, D, tn, tk)


# ---------------------------------------------------------------------------
# Forward: logits = x @ weight.T
# ---------------------------------------------------------------------------

def prototypes_forward(x, weight=None, *, tm=TM_DEFAULT, tn=TN_DEFAULT,
                       tk=TK_DEFAULT, compute_dtype=None,
                       out_dtype=jnp.float32, prepared=None):
    """nn.Linear(output_dim, num_prototypes, bias=False) forward.

    `prepared` is the cached output of prepare_prototype_weight(); if absent,
    the weight is transposed/padded here (one-off / standalone use)."""
    B, D = x.shape
    if prepared is None:
        assert weight is not None
        prepared = prepare_prototype_weight(weight, tn=tn, tk=tk,
                                            compute_dtype=compute_dtype)
    wtp, (P, Dw, tn, tk) = prepared
    assert D == Dw, "feature dims must match"
    Dp, Pp = wtp.shape

    # Sublane alignment: bf16 packs two rows per sublane -> 16-row multiples.
    sub = 16 if compute_dtype == jnp.bfloat16 else 8
    tm = min(tm, _round_up(B, sub))
    Bp = _round_up(B, tm)

    xp = x
    if (Bp, Dp) != (B, D):
        xp = jnp.pad(x, ((0, Bp - B), (0, Dp - D)))
    if compute_dtype is not None and xp.dtype != compute_dtype:
        xp = xp.astype(compute_dtype)

    if Dp <= tk:
        # Common case: whole feature dim in one tile -> no K axis, no
        # accumulator copy, pure 2-D parallel grid (megacore-friendly).
        out = pl.pallas_call(
            _matmul_kernel,
            out_shape=jax.ShapeDtypeStruct((Bp, Pp), out_dtype),
            grid_spec=pltpu.PrefetchScalarGridSpec(
                num_scalar_prefetch=0,
                grid=(Bp // tm, Pp // tn),
                in_specs=[pl.BlockSpec((tm, Dp), lambda i, j: (i, 0)),
                          pl.BlockSpec((Dp, tn), lambda i, j: (0, j))],
                out_specs=pl.BlockSpec((tm, tn), lambda i, j: (i, j))),
            compiler_params=pltpu.CompilerParams(
                dimension_semantics=("parallel", "parallel")),
        )(xp, wtp)
    else:
        # Large-D fallback: accumulate over K in VMEM scratch.
        out = pl.pallas_call(
            _matmul_acc_kernel,
            out_shape=jax.ShapeDtypeStruct((Bp, Pp), out_dtype),
            grid_spec=pltpu.PrefetchScalarGridSpec(
                num_scalar_prefetch=0,
                grid=(Bp // tm, Pp // tn, Dp // tk),
                in_specs=[pl.BlockSpec((tm, tk), lambda i, j, k: (i, k)),
                          pl.BlockSpec((tk, tn), lambda i, j, k: (k, j))],
                out_specs=pl.BlockSpec((tm, tn), lambda i, j, k: (i, j)),
                scratch_shapes=[pltpu.VMEM((tm, tn), jnp.float32)]),
            compiler_params=pltpu.CompilerParams(
                dimension_semantics=("parallel", "parallel", "arbitrary")),
        )(xp, wtp)

    if (Bp, Pp) != (B, P):
        out = out[:B, :P]
    return out


# ---------------------------------------------------------------------------
# normalize_prototypes
# ---------------------------------------------------------------------------

def normalize_prototypes(weight, *, row_tile=512):
    """L2-normalize each prototype row (mirrors Prototypes.normalize_prototypes)."""
    P, D = weight.shape
    Dp = _round_up(D, 128)
    rp = min(row_tile, _round_up(P, 8))
    Pp = _round_up(P, rp)

    padded = (Pp, Dp) != (P, D)
    wp = jnp.pad(weight, ((0, Pp - P), (0, Dp - D))) if padded else weight

    call_kwargs = {}
    if not padded:
        # In-place-style update (mirrors torch's copy_); no second buffer.
        call_kwargs["input_output_aliases"] = {0: 0}

    out = pl.pallas_call(
        _l2_normalize_rows_kernel,
        out_shape=jax.ShapeDtypeStruct((Pp, Dp), weight.dtype),
        grid_spec=pltpu.PrefetchScalarGridSpec(
            num_scalar_prefetch=0,
            grid=(Pp // rp,),
            in_specs=[pl.BlockSpec((rp, Dp), lambda i: (i, 0))],
            out_specs=pl.BlockSpec((rp, Dp), lambda i: (i, 0))),
        compiler_params=pltpu.CompilerParams(
            dimension_semantics=("parallel",)),
        **call_kwargs,
    )(wp)
    return out[:P, :D] if padded else out


# ---------------------------------------------------------------------------
# Module mirror
# ---------------------------------------------------------------------------

class Prototypes:
    """JAX/Pallas mirror of the PyTorch Prototypes module.

    Set compute_dtype=jnp.bfloat16 in production on v5e/v6e/v7x (MXU-native,
    halves operand DMA bytes); f32 default keeps the reference check tight."""

    def __init__(self, key, output_dim, num_prototypes, *, compute_dtype=None):
        # nn.Linear default init: U(-1/sqrt(fan_in), 1/sqrt(fan_in)).
        bound = 1.0 / (output_dim ** 0.5)
        self.weight = jax.random.uniform(
            key, (num_prototypes, output_dim), jnp.float32, -bound, bound)
        self.compute_dtype = compute_dtype
        self._refresh_cache()

    def _refresh_cache(self):
        # Transpose / pad / cast the weight once; reused by every forward.
        self._prepared = prepare_prototype_weight(
            self.weight, compute_dtype=self.compute_dtype)

    def normalize_prototypes(self):
        # TODO(synk): PyTorch does an in-place copy_ under no_grad; here we
        # rebind the weight and refresh the cached padded/transposed copy.
        self.weight = normalize_prototypes(self.weight)
        self._refresh_cache()

    def __call__(self, x):
        return prototypes_forward(x, compute_dtype=self.compute_dtype,
                                  prepared=self._prepared)


# ---------------------------------------------------------------------------

if __name__ == "__main__":
    key = jax.random.PRNGKey(0)
    wkey, xkey, wkey2, xkey2 = jax.random.split(key, 4)

    # --- main path: small Prototypes module, f32 compute (tight tolerance) --
    batch, output_dim, num_prototypes = 2, 32, 16

    proto = Prototypes(wkey, output_dim, num_prototypes)
    proto.normalize_prototypes()
    x = jax.random.normal(xkey, (batch, output_dim), jnp.float32)

    logits = proto(x)
    logits = jax.block_until_ready(logits)

    assert logits.shape == (batch, num_prototypes)
    ref = x @ proto.weight.T
    assert jnp.allclose(logits, ref, atol=1e-4, rtol=1e-4), "f32 forward mismatch"
    assert jnp.allclose(jnp.linalg.norm(proto.weight, axis=-1), 1.0, atol=1e-5)

    # --- bf16 operand path (loose tolerance, production default on v6e/v7x) --
    proto_bf16 = Prototypes(wkey, output_dim, num_prototypes,
                            compute_dtype=jnp.bfloat16)
    proto_bf16.normalize_prototypes()
    logits_bf16 = jax.block_until_ready(proto_bf16(x))
    assert jnp.allclose(logits_bf16, ref, atol=2e-2, rtol=2e-2), "bf16 forward mismatch"

    # --- K-reduction fallback path (D larger than one K tile) ----------------
    B2, D2, P2 = 8, 256, 16
    w2 = jax.random.normal(wkey2, (P2, D2), jnp.float32) * 0.05
    x2 = jax.random.normal(xkey2, (B2, D2), jnp.float32)
    out2 = jax.block_until_ready(prototypes_forward(x2, w2, tk=128))
    assert out2.shape == (B2, P2)
    assert jnp.allclose(out2, x2 @ w2.T, atol=1e-4, rtol=1e-4), "K-split mismatch"

    print("KERNEL_OK")
</pallas_src>

<mosaic_0001>
module attributes {stable_mosaic.version = 11 : i64} {
  func.func @_l2_normalize_rows_kernel(%arg0: i32, %arg1: memref<16x128xf32, #tpu.memory_space<vmem>>, %arg2: memref<16x128xf32, #tpu.memory_space<vmem>>) attributes {dimension_semantics = [#tpu.dimension_semantics<parallel>], iteration_bounds = array<i64: 1>, scalar_prefetch = 0 : i64, scratch_operands = 0 : i64, tpu.core_type = #tpu.core_type<tc>, window_params = [{transform_indices = @transform_0, window_bounds = array<i64: 16, 128>}, {transform_indices = @transform_1, window_bounds = array<i64: 16, 128>}]} {
    %c0 = arith.constant 0 : index
    %c0_0 = arith.constant 0 : index
    %0 = vector.load %arg1[%c0, %c0_0] : memref<16x128xf32, #tpu.memory_space<vmem>>, vector<16x128xf32>
    %1 = arith.mulf %0, %0 : vector<16x128xf32>
    %cst = arith.constant dense<0.000000e+00> : vector<16xf32>
    %2 = vector.multi_reduction <add>, %1, %cst [1] : vector<16x128xf32> to vector<16xf32>
    %3 = vector.shape_cast %2 : vector<16xf32> to vector<16x1xf32>
    %cst_1 = arith.constant 1.000000e-24 : f32
    %4 = vector.broadcast %cst_1 : f32 to vector<16x1xf32>
    %5 = arith.maximumf %3, %4 : vector<16x1xf32>
    %6 = math.rsqrt %5 : vector<16x1xf32>
    %7 = vector.broadcast %6 : vector<16x1xf32> to vector<16x128xf32>
    %8 = arith.mulf %0, %7 : vector<16x128xf32>
    %c0_2 = arith.constant 0 : index
    %c0_3 = arith.constant 0 : index
    %9 = vector.load %arg2[%c0_2, %c0_3] : memref<16x128xf32, #tpu.memory_space<vmem>>, vector<16x128xf32>
    tpu.vector_store %arg2[%c0_2, %c0_3], %8 {strides = array<i32>} : memref<16x128xf32, #tpu.memory_space<vmem>>, vector<16x128xf32>,
    return
  }
  func.func @transform_0(%arg0: i32) -> (i32, i32) {
    %c0_i32 = arith.constant 0 : i32
    %c0_i32_0 = arith.constant 0 : i32
    return %arg0, %c0_i32 : i32, i32
  }
  func.func @transform_1(%arg0: i32) -> (i32, i32) {
    %c0_i32 = arith.constant 0 : i32
    %c0_i32_0 = arith.constant 0 : i32
    return %arg0, %c0_i32 : i32, i32
  }
}

</mosaic_0001>

<llo_original>
// kernel: tpu_custom_call.1
$region0: #{tpu_custom_call.1}
  #allocation0 [shape = 'u32[]', space=smem, size = 0x4, offset = 0x4, fixed_abs, tag = 'smem constant byte address 0x4 - core index']
  #allocation1 [shape = 'u32[144,128]{1,0:T(1,128)}', space=vmem, size = 0x12000, scoped, tag = 'internal scratch']
  %s0 = inlined_call_operand.hbm [shape: f32[16,128], index: 0, kind: input, shape index: {}]
  %s1 = inlined_call_operand.hbm [shape: f32[16,128], index: 1, kind: output, shape index: {}]
  %s2 = sld [smem:[#allocation0]]
  $region18: #{tpu_custom_call.1} parent=0
    _
  %s4 = ssub.s32 1, %s2
  %s5 = scalar_select 0, %s4, %s2
  $region1: #{tpu_custom_call.1} parent=0
    #allocation2 [shape = 'u8[8192]{0}', space=vmem, size = 0x2000, scoped, tag = 'input window, operand 0, single buffered']
    #allocation3 [shape = 's32[1]{0}', space=sflag, size = 0x4, scoped, tag = 'scoped memory for tpu_custom_call.1']
    #allocation4 [shape = 's32[1]{0}', space=sflag, size = 0x4, scoped, tag = 'scoped memory for tpu_custom_call.1']
    #allocation5 [shape = 'u8[8192]{0}', space=vmem, size = 0x2000, scoped, tag = 'output window, operand 0, single buffered']
    %6 = vsyncpa [#allocation3], 0
    %7 = vsyncpa [#allocation4], 0
    // Predicated region
    $region2: #{tpu_custom_call.1} parent=1 // pred_check
      _
    $region3: #{tpu_custom_call.1} parent=1 // pred_check_branch
      %9 = sbr.rel (0) target = $region5
    $region4: #{tpu_custom_call.1} parent=1 // pred_region
      %s11 = ssub.s32 256, 256
      %12 = vsyncadd [#allocation3], %s11
      %s13 = sshll.u32 [#allocation2], 4
      %s14 = int_to_ptr.vmem [resolvable:$true] %s13
      %19 = dma.hbm_to_vmem [thread:$0]  %s0, 256, %s14, [#allocation3], 128, 128, 8
    $region5: #{tpu_custom_call.1} parent=1 // pred_fallthru
      _
    // Predicated region
    $region6: #{tpu_custom_call.1} parent=1 // pred_check
      _
    $region7: #{tpu_custom_call.1} parent=1 // pred_check_branch
      %21 = sbr.rel (0) target = $region9
    $region8: #{tpu_custom_call.1} parent=1 // pred_region
      %22 = dma.done [#allocation3], 256
    $region9: #{tpu_custom_call.1} parent=1 // pred_fallthru
      _
    %v23 = vld [vmem:[#allocation2] sm:$0xff]
    %v24 = vld [vmem:[#allocation2 + $0x8] sm:$0xff]
    %v25 = vmul.f32 %v23, %v23
    %v26 = vmul.f32 %v24, %v24
    %27 = vadd.xlane.f32.xlu0 %v25
    %v28 = vpop.xlane.xlu0 %27
    %29 = vadd.xlane.f32.xlu0 %v26
    %v30 = vpop.xlane.xlu0 %29
    %v31 = vmax.f32 %v28, 1e-24
    %v32 = vmax.f32 %v30, 1e-24
    %v33 = vrsqrt.pop %v31
    %v34 = vrsqrt.pop %v32
    %v35 = vmul.f32 %v23, %v33
    %v36 = vmul.f32 %v24, %v34
    %37 = vst [vmem:[#allocation5] sm:$0xff] %v35
    %38 = vst [vmem:[#allocation5 + $0x8] sm:$0xff] %v36
    // Predicated region
    $region10: #{tpu_custom_call.1} parent=1 // pred_check
      _
    $region11: #{tpu_custom_call.1} parent=1 // pred_check_branch
      %40 = sbr.rel (0) target = $region13
    $region12: #{tpu_custom_call.1} parent=1 // pred_region
      %s42 = ssub.s32 256, 256
      %43 = vsyncadd [#allocation4], %s42
      %s44 = sshll.u32 [#allocation5], 4
      %s45 = int_to_ptr.vmem [resolvable:$true] %s44
      %50 = dma.vmem_to_hbm [thread:$0]  %s45, 256, %s1, [#allocation4], 128, 128, 8
    $region13: #{tpu_custom_call.1} parent=1 // pred_fallthru
      _
    // Predicated region
    $region14: #{tpu_custom_call.1} parent=1 // pred_check
      _
    $region15: #{tpu_custom_call.1} parent=1 // pred_check_branch
      %52 = sbr.rel (0) target = $region17
    $region16: #{tpu_custom_call.1} parent=1 // pred_region
      %53 = dma.done [#allocation4], 256
    $region17: #{tpu_custom_call.1} parent=1 // pred_fallthru
      _
    %54 = vsyncpa [#allocation3], 1
    %55 = vsyncpa [#allocation4], 1

</llo_original>
